<compile_context>
chip_gen: v7x
topology: tpu7x:2x2x1
jax: 0.10.0
libtpu: 0.0.40
codegen_flags: <defaults>
</compile_context>

<pallas_src>
import jax
import jax.numpy as jnp
from jax.experimental import pallas as pl
from jax.experimental.pallas import tpu as pltpu

_IGNORE_INDEX = -100  # torch.nn.CrossEntropyLoss default


def _lse_rows_kernel(logits_ref, lse_ref):
    """Per-row logsumexp of a (TN, C) logits tile -> (TN, 1) f32."""
    x = logits_ref[...].astype(jnp.float32)                  # (TN, C) f32
    m = jnp.max(x, axis=-1, keepdims=True)                   # (TN, 1)
    sum_exp = jnp.sum(jnp.exp(x - m), axis=-1, keepdims=True)
    lse_ref[...] = m + jnp.log(sum_exp)                      # (TN, 1)


def _vmem_capacity_bytes() -> int:
    """Physical VMEM of the current TPU generation (conservative fallback)."""
    try:
        return int(pltpu.get_tpu_info().vmem_capacity_bytes)
    except Exception:
        return 64 * 1024 * 1024  # v7x-sized: safe on every generation


def _choose_row_tile(n: int, c: int, vmem_cap: int) -> int:
    """Pick TN (multiple of 128 when possible) from an f32-equivalent budget."""
    # v7x (64 MiB VMEM): ~4 MiB per f32 tile; v5e/v6e (128 MiB): ~8 MiB.
    budget_f32 = (4 << 20) if vmem_cap <= (64 << 20) else (8 << 20)
    rows = (budget_f32 // max(1, c * 4)) // 128 * 128
    rows = max(128, rows)
    # Keep >= 4 grid steps when the batch is big enough (megacore + pipelining).
    quarter = ((pl.cdiv(n, 4) + 127) // 128) * 128
    rows = min(rows, max(128, quarter))
    # Never larger than the batch rounded up to the next 128.
    n_ceil = ((n + 127) // 128) * 128
    return max(8, min(rows, n_ceil))


def ce_loss(logits: jax.Array, targets: jax.Array,
            ignore_index: int = _IGNORE_INDEX) -> jax.Array:
    """Mean cross-entropy on logits [N, C], int targets [N] (torch semantics).

    Note: if every target equals ignore_index the result is NaN (0/0), which
    matches torch.nn.CrossEntropyLoss with reduction='mean'.
    """
    n, c = logits.shape
    itemsize = jnp.dtype(logits.dtype).itemsize

    vmem_cap = _vmem_capacity_bytes()
    tn = _choose_row_tile(n, c, vmem_cap)
    num_tiles = pl.cdiv(n, tn)

    # VMEM accounting in f32-equivalent bytes: 2x double-buffered source tile
    # + ~3x f32 intermediates + slack, capped below physical VMEM.
    src_tile = tn * c * itemsize
    f32_tile = tn * c * 4
    need = 2 * src_tile + 3 * f32_tile + (2 << 20)
    vmem_limit = int(min(max(need, 32 << 20),
                         max(vmem_cap - (16 << 20), 32 << 20)))

    lse = pl.pallas_call(
        _lse_rows_kernel,
        out_shape=jax.ShapeDtypeStruct((n, 1), jnp.float32),
        grid_spec=pltpu.PrefetchScalarGridSpec(
            num_scalar_prefetch=0,
            grid=(num_tiles,),
            in_specs=[pl.BlockSpec((tn, c), lambda i: (i, 0))],   # logits tile
            out_specs=pl.BlockSpec((tn, 1), lambda i: (i, 0)),    # per-row lse
        ),
        compiler_params=pltpu.CompilerParams(
            dimension_semantics=("parallel",),
            vmem_limit_bytes=vmem_limit,
        ),
    )(logits)[:, 0]                                               # (N,) f32

    # Target-logit gather + masked mean in the wrapper (reads only N elements).
    targets_i = targets.astype(jnp.int32)
    valid = targets_i != ignore_index
    safe_tgt = jnp.clip(targets_i, 0, c - 1)                      # keep gather in-bounds
    tgt_logit = jnp.take_along_axis(
        logits, safe_tgt[:, None], axis=-1)[:, 0].astype(jnp.float32)

    per_row = jnp.where(valid, lse - tgt_logit, 0.0)              # where, not *
    return jnp.sum(per_row) / jnp.sum(valid.astype(jnp.float32))


class CELossPallas:
    """Mirror of the PyTorch CELoss module: outputs is a dict with 'predicts'."""

    def __call__(self, outputs: dict, targets):
        return ce_loss(outputs["predicts"], targets)


if __name__ == "__main__":
    key = jax.random.PRNGKey(0)
    k_logits, k_tgt = jax.random.split(key)

    N, C = 8, 32  # batch of 8, 32 classes
    logits = jax.random.normal(k_logits, (N, C), dtype=jnp.float32)
    targets = jax.random.randint(k_tgt, (N,), 0, C, dtype=jnp.int32)

    loss_fn = CELossPallas()
    loss = loss_fn({"predicts": logits}, targets)
    jax.block_until_ready(loss)

    # sanity check against a plain-JAX reference
    ref = jnp.mean(
        jax.nn.logsumexp(logits, axis=-1)
        - jnp.take_along_axis(logits, targets[:, None], axis=-1)[:, 0]
    )
    assert jnp.allclose(loss, ref, rtol=1e-5, atol=1e-5), (loss, ref)

    print("KERNEL_OK")
</pallas_src>

<mosaic_0001>
module attributes {stable_mosaic.version = 11 : i64} {
  func.func @_lse_rows_kernel(%arg0: i32, %arg1: memref<128x32xf32, #tpu.memory_space<vmem>>, %arg2: memref<128x1xf32, #tpu.memory_space<vmem>>) attributes {dimension_semantics = [#tpu.dimension_semantics<parallel>], iteration_bounds = array<i64: 1>, scalar_prefetch = 0 : i64, scratch_operands = 0 : i64, tpu.core_type = #tpu.core_type<tc>, window_params = [{transform_indices = @transform_0, window_bounds = array<i64: 128, 32>}, {transform_indices = @transform_1, window_bounds = array<i64: 128, 1>}]} {
    %c0 = arith.constant 0 : index
    %c0_0 = arith.constant 0 : index
    %0 = vector.load %arg1[%c0, %c0_0] : memref<128x32xf32, #tpu.memory_space<vmem>>, vector<128x32xf32>
    %cst = arith.constant dense<0xFF800000> : vector<128xf32>
    %1 = vector.multi_reduction <maximumf>, %0, %cst [1] : vector<128x32xf32> to vector<128xf32>
    %2 = vector.shape_cast %1 : vector<128xf32> to vector<128x1xf32>
    %3 = vector.broadcast %2 : vector<128x1xf32> to vector<128x32xf32>
    %4 = arith.subf %0, %3 : vector<128x32xf32>
    %5 = math.exp %4 : vector<128x32xf32>
    %cst_1 = arith.constant dense<0.000000e+00> : vector<128xf32>
    %6 = vector.multi_reduction <add>, %5, %cst_1 [1] : vector<128x32xf32> to vector<128xf32>
    %7 = vector.shape_cast %6 : vector<128xf32> to vector<128x1xf32>
    %8 = math.log %7 : vector<128x1xf32>
    %9 = arith.addf %2, %8 : vector<128x1xf32>
    %c0_2 = arith.constant 0 : index
    %c0_3 = arith.constant 0 : index
    %10 = vector.load %arg2[%c0_2, %c0_3] : memref<128x1xf32, #tpu.memory_space<vmem>>, vector<128x1xf32>
    tpu.vector_store %arg2[%c0_2, %c0_3], %9 {strides = array<i32>} : memref<128x1xf32, #tpu.memory_space<vmem>>, vector<128x1xf32>,
    return
  }
  func.func @transform_0(%arg0: i32) -> (i32, i32) {
    %c0_i32 = arith.constant 0 : i32
    %c0_i32_0 = arith.constant 0 : i32
    return %arg0, %c0_i32 : i32, i32
  }
  func.func @transform_1(%arg0: i32) -> (i32, i32) {
    %c0_i32 = arith.constant 0 : i32
    %c0_i32_0 = arith.constant 0 : i32
    return %arg0, %c0_i32 : i32, i32
  }
}

</mosaic_0001>

<llo_original>
// kernel: tpu_custom_call.1
$region0: #{tpu_custom_call.1}
  #allocation0 [shape = 'u32[]', space=smem, size = 0x4, offset = 0x4, fixed_abs, tag = 'smem constant byte address 0x4 - core index']
  #allocation1 [shape = 'u32[144,128]{1,0:T(1,128)}', space=vmem, size = 0x12000, scoped, tag = 'internal scratch']
  %s0 = inlined_call_operand.hbm [shape: f32[8,32], index: 0, kind: input, shape index: {}]
  %s1 = inlined_call_operand.vmem [shape: f32[8,1], index: 1, kind: output, shape index: {}]
  %s2 = sld [smem:[#allocation0]]
  $region52: #{tpu_custom_call.1} parent=0
    _
  %s4 = ssub.s32 1, %s2
  %s5 = scalar_select 0, %s4, %s2
  $region1: #{tpu_custom_call.1} parent=0
    #allocation2 [shape = 'u8[65536]{0}', space=vmem, size = 0x10000, scoped, tag = 'input window, operand 0, single buffered']
    #allocation3 [shape = 's32[1]{0}', space=sflag, size = 0x4, scoped, tag = 'scoped memory for tpu_custom_call.1']
    #allocation4 [shape = 'u8[65536]{0}', space=vmem, size = 0x10000, scoped, tag = 'output window, operand 0, single buffered']
    %6 = vsyncpa [#allocation3], 0
    // Predicated region
    $region2: #{tpu_custom_call.1} parent=1 // pred_check
      _
    $region3: #{tpu_custom_call.1} parent=1 // pred_check_branch
      %8 = sbr.rel (0) target = $region5
    $region4: #{tpu_custom_call.1} parent=1 // pred_region
      %s10 = ssub.s32 2048, 128
      %11 = vsyncadd [#allocation3], %s10
      %s12 = sshll.u32 [#allocation2], 4
      %s13 = int_to_ptr.vmem [resolvable:$true] %s12
      %18 = dma.hbm_to_vmem [thread:$0]  %s0, 128, %s13, [#allocation3], 128, 128, 8
    $region5: #{tpu_custom_call.1} parent=1 // pred_fallthru
      _
    // Predicated region
    $region6: #{tpu_custom_call.1} parent=1 // pred_check
      _
    $region7: #{tpu_custom_call.1} parent=1 // pred_check_branch
      %20 = sbr.rel (0) target = $region9
    $region8: #{tpu_custom_call.1} parent=1 // pred_region
      %21 = dma.done [#allocation3], 2048
    $region9: #{tpu_custom_call.1} parent=1 // pred_fallthru
      _
    %v22 = vld [vmem:[#allocation2] sm:$0xff]
    %v23 = vld [vmem:[#allocation2 + $0x8] sm:$0xff]
    %v24 = vld [vmem:[#allocation2 + $0x10] sm:$0xff]
    %v25 = vld [vmem:[#allocation2 + $0x18] sm:$0xff]
    %v26 = vld [vmem:[#allocation2 + $0x20] sm:$0xff]
    %v27 = vld [vmem:[#allocation2 + $0x28] sm:$0xff]
    %v28 = vld [vmem:[#allocation2 + $0x30] sm:$0xff]
    %v29 = vld [vmem:[#allocation2 + $0x38] sm:$0xff]
    %v30 = vld [vmem:[#allocation2 + $0x40] sm:$0xff]
    %v31 = vld [vmem:[#allocation2 + $0x48] sm:$0xff]
    %v32 = vld [vmem:[#allocation2 + $0x50] sm:$0xff]
    %v33 = vld [vmem:[#allocation2 + $0x58] sm:$0xff]
    %v34 = vld [vmem:[#allocation2 + $0x60] sm:$0xff]
    %v35 = vld [vmem:[#allocation2 + $0x68] sm:$0xff]
    %v36 = vld [vmem:[#allocation2 + $0x70] sm:$0xff]
    %v37 = vld [vmem:[#allocation2 + $0x78] sm:$0xff]
    %vm38 = vcmask 261120
    %v39 = vsel %vm38, %v22, -inf
    %40 = vmax.xlane.f32.xlu0 %v39
    %v41 = vpop.xlane.xlu0 %40
    %v42 = vsel %vm38, %v23, -inf
    %43 = vmax.xlane.f32.xlu0 %v42
    %v44 = vpop.xlane.xlu0 %43
    %v45 = vsel %vm38, %v24, -inf
    %46 = vmax.xlane.f32.xlu0 %v45
    %v47 = vpop.xlane.xlu0 %46
    %v48 = vsel %vm38, %v25, -inf
    %49 = vmax.xlane.f32.xlu0 %v48
    %v50 = vpop.xlane.xlu0 %49
    %v51 = vsel %vm38, %v26, -inf
    %52 = vmax.xlane.f32.xlu0 %v51
    %v53 = vpop.xlane.xlu0 %52
    %v54 = vsel %vm38, %v27, -inf
    %55 = vmax.xlane.f32.xlu0 %v54
    %v56 = vpop.xlane.xlu0 %55
    %v57 = vsel %vm38, %v28, -inf
    %58 = vmax.xlane.f32.xlu0 %v57
    %v59 = vpop.xlane.xlu0 %58
    %v60 = vsel %vm38, %v29, -inf
    %61 = vmax.xlane.f32.xlu0 %v60
    %v62 = vpop.xlane.xlu0 %61
    %v63 = vsel %vm38, %v30, -inf
    %64 = vmax.xlane.f32.xlu0 %v63
    %v65 = vpop.xlane.xlu0 %64
    %v66 = vsel %vm38, %v31, -inf
    %67 = vmax.xlane.f32.xlu0 %v66
    %v68 = vpop.xlane.xlu0 %67
    %v69 = vsel %vm38, %v32, -inf
    %70 = vmax.xlane.f32.xlu0 %v69
    %v71 = vpop.xlane.xlu0 %70
    %v72 = vsel %vm38, %v33, -inf
    %73 = vmax.xlane.f32.xlu0 %v72
    %v74 = vpop.xlane.xlu0 %73
    %v75 = vsel %vm38, %v34, -inf
    %76 = vmax.xlane.f32.xlu0 %v75
    %v77 = vpop.xlane.xlu0 %76
    %v78 = vsel %vm38, %v35, -inf
    %79 = vmax.xlane.f32.xlu0 %v78
    %v80 = vpop.xlane.xlu0 %79
    %v81 = vsel %vm38, %v36, -inf
    %82 = vmax.xlane.f32.xlu0 %v81
    %v83 = vpop.xlane.xlu0 %82
    %v84 = vsel %vm38, %v37, -inf
    %85 = vmax.xlane.f32.xlu0 %v84
    %v86 = vpop.xlane.xlu0 %85
    %v87 = vsub.f32 %v22, %v41
    %v88 = vsub.f32 %v23, %v44
    %v89 = vsub.f32 %v24, %v47
    %v90 = vsub.f32 %v25, %v50
    %v91 = vsub.f32 %v26, %v53
    %v92 = vsub.f32 %v27, %v56
    %v93 = vsub.f32 %v28, %v59
    %v94 = vsub.f32 %v29, %v62
    %v95 = vsub.f32 %v30, %v65
    %v96 = vsub.f32 %v31, %v68
    %v97 = vsub.f32 %v32, %v71
    %v98 = vsub.f32 %v33, %v74
    %v99 = vsub.f32 %v34, %v77
    %v100 = vsub.f32 %v35, %v80
    %v101 = vsub.f32 %v36, %v83
    %v102 = vsub.f32 %v37, %v86
    %v103 = vmul.f32 %v87, 1.442695
    %v104 = vpow.pop %v103
    %v105 = vmul.f32 %v88, 1.442695
    %v106 = vpow.pop %v105
    %v107 = vmul.f32 %v89, 1.442695
    %v108 = vpow.pop %v107
    %v109 = vmul.f32 %v90, 1.442695
    %v110 = vpow.pop %v109
    %v111 = vmul.f32 %v91, 1.442695
    %v112 = vpow.pop %v111
    %v113 = vmul.f32 %v92, 1.442695
    %v114 = vpow.pop %v113
    %v115 = vmul.f32 %v93, 1.442695
    %v116 = vpow.pop %v115
    %v117 = vmul.f32 %v94, 1.442695
    %v118 = vpow.pop %v117
    %v119 = vmul.f32 %v95, 1.442695
    %v120 = vpow.pop %v119
    %v121 = vmul.f32 %v96, 1.442695
    %v122 = vpow.pop %v121
    %v123 = vmul.f32 %v97, 1.442695
    %v124 = vpow.pop %v123
    %v125 = vmul.f32 %v98, 1.442695
    %v126 = vpow.pop %v125
    %v127 = vmul.f32 %v99, 1.442695
    %v128 = vpow.pop %v127
    %v129 = vmul.f32 %v100, 1.442695
    %v130 = vpow.pop %v129
    %v131 = vmul.f32 %v101, 1.442695
    %v132 = vpow.pop %v131
    %v133 = vmul.f32 %v102, 1.442695
    %v134 = vpow.pop %v133
    %v135 = vsel %vm38, %v104, 0.0
    %136 = vadd.xlane.f32.xlu0 %v135
    %v137 = vpop.xlane.xlu0 %136
    %v138 = vsel %vm38, %v106, 0.0
    %139 = vadd.xlane.f32.xlu0 %v138
    %v140 = vpop.xlane.xlu0 %139
    %v141 = vsel %vm38, %v108, 0.0
    %142 = vadd.xlane.f32.xlu0 %v141
    %v143 = vpop.xlane.xlu0 %142
    %v144 = vsel %vm38, %v110, 0.0
    %145 = vadd.xlane.f32.xlu0 %v144
    %v146 = vpop.xlane.xlu0 %145
    %v147 = vsel %vm38, %v112, 0.0
    %148 = vadd.xlane.f32.xlu0 %v147
    %v149 = vpop.xlane.xlu0 %148
    %v150 = vsel %vm38, %v114, 0.0
    %151 = vadd.xlane.f32.xlu0 %v150
    %v152 = vpop.xlane.xlu0 %151
    %v153 = vsel %vm38, %v116, 0.0
    %154 = vadd.xlane.f32.xlu0 %v153
    %v155 = vpop.xlane.xlu0 %154
    %v156 = vsel %vm38, %v118, 0.0
    %157 = vadd.xlane.f32.xlu0 %v156
    %v158 = vpop.xlane.xlu0 %157
    %v159 = vsel %vm38, %v120, 0.0
    %160 = vadd.xlane.f32.xlu0 %v159
    %v161 = vpop.xlane.xlu0 %160
    %v162 = vsel %vm38, %v122, 0.0
    %163 = vadd.xlane.f32.xlu0 %v162
    %v164 = vpop.xlane.xlu0 %163
    %v165 = vsel %vm38, %v124, 0.0
    %166 = vadd.xlane.f32.xlu0 %v165
    %v167 = vpop.xlane.xlu0 %166
    %v168 = vsel %vm38, %v126, 0.0
    %169 = vadd.xlane.f32.xlu0 %v168
    %v170 = vpop.xlane.xlu0 %169
    %v171 = vsel %vm38, %v128, 0.0
    %172 = vadd.xlane.f32.xlu0 %v171
    %v173 = vpop.xlane.xlu0 %172
    %v174 = vsel %vm38, %v130, 0.0
    %175 = vadd.xlane.f32.xlu0 %v174
    %v176 = vpop.xlane.xlu0 %175
    %v177 = vsel %vm38, %v132, 0.0
    %178 = vadd.xlane.f32.xlu0 %v177
    %v179 = vpop.xlane.xlu0 %178
    %v180 = vsel %vm38, %v134, 0.0
    %181 = vadd.xlane.f32.xlu0 %v180
    %v182 = vpop.xlane.xlu0 %181
    %v183 = vlog2.pop %v137
    %v184 = vmul.f32 %v183, 0.6931472
    %v185 = vlog2.pop %v140
    %v186 = vmul.f32 %v185, 0.6931472
    %v187 = vlog2.pop %v143
    %v188 = vmul.f32 %v187, 0.6931472
    %v189 = vlog2.pop %v146
    %v190 = vmul.f32 %v189, 0.6931472
    %v191 = vlog2.pop %v149
    %v192 = vmul.f32 %v191, 0.6931472
    %v193 = vlog2.pop %v152
    %v194 = vmul.f32 %v193, 0.6931472
    %v195 = vlog2.pop %v155
    %v196 = vmul.f32 %v195, 0.6931472
    %v197 = vlog2.pop %v158
    %v198 = vmul.f32 %v197, 0.6931472
    %v199 = vlog2.pop %v161
    %v200 = vmul.f32 %v199, 0.6931472
    %v201 = vlog2.pop %v164
    %v202 = vmul.f32 %v201, 0.6931472
    %v203 = vlog2.pop %v167
    %v204 = vmul.f32 %v203, 0.6931472
    %v205 = vlog2.pop %v170
    %v206 = vmul.f32 %v205, 0.6931472
    %v207 = vlog2.pop %v173
    %v208 = vmul.f32 %v207, 0.6931472
    %v209 = vlog2.pop %v176
    %v210 = vmul.f32 %v209, 0.6931472
    %v211 = vlog2.pop %v179
    %v212 = vmul.f32 %v211, 0.6931472
    %v213 = vlog2.pop %v182
    %v214 = vmul.f32 %v213, 0.6931472
    %v215 = vadd.f32 %v41, %v184
    %v216 = vadd.f32 %v44, %v186
    %v217 = vadd.f32 %v47, %v188
    %v218 = vadd.f32 %v50, %v190
    %v219 = vadd.f32 %v53, %v192
    %v220 = vadd.f32 %v56, %v194
    %v221 = vadd.f32 %v59, %v196
    %v222 = vadd.f32 %v62, %v198
    %v223 = vadd.f32 %v65, %v200
    %v224 = vadd.f32 %v68, %v202
    %v225 = vadd.f32 %v71, %v204
    %v226 = vadd.f32 %v74, %v206
    %v227 = vadd.f32 %v77, %v208
    %v228 = vadd.f32 %v80, %v210
    %v229 = vadd.f32 %v83, %v212
    %v230 = vadd.f32 %v86, %v214
    %vm231 = vcmask 7168
    %232 = vst.msk [vmem:[#allocation4] sm:$0xff] %vm231, %v215
    %233 = vst.msk [vmem:[#allocation4 + $0x8] sm:$0xff] %vm231, %v216
    %234 = vst.msk [vmem:[#allocation4 + $0x10] sm:$0xff] %vm231, %v217
    %235 = vst.msk [vmem:[#allocation4 + $0x18] sm:$0xff] %vm231, %v218
    %236 = vst.msk [vmem:[#allocation4 + $0x20] sm:$0xff] %vm231, %v219
    %237 = vst.msk [vmem:[#allocation4 + $0x28] sm:$0xff] %vm231, %v220
    %238 = vst.msk [vmem:[#allocation4 + $0x30] sm:$0xff] %vm231, %v221
    %239 = vst.msk [vmem:[#allocation4 + $0x38] sm:$0xff] %vm231, %v222
    %240 = vst.msk [vmem:[#allocation4 + $0x40] sm:$0xff] %vm231, %v223
    %241 = vst.msk [vmem:[#allocation4 + $0x48] sm:$0xff] %vm231, %v224
    %242 = vst.msk [vmem:[#allocation4 + $0x50] sm:$0xff] %vm231, %v225
    %243 = vst.msk [vmem:[#allocation4 + $0x58] sm:$0xff] %vm231, %v226
    %244 = vst.msk [vmem:[#allocation4 + $0x60] sm:$0xff] %vm231, %v227
    %245 = vst.msk [vmem:[#allocation4 + $0x68] sm:$0xff] %vm231, %v228
    %246 = vst.msk [vmem:[#allocation4 + $0x70] sm:$0xff] %vm231, %v229
    %247 = vst.msk [vmem:[#allocation4 + $0x78] sm:$0xff] %vm231, %v230
    // Predicated region
    $region10: #{tpu_custom_call.1} parent=1 // pred_check
      _
    $region11: #{tpu_custom_call.1} parent=1 // pred_check_branch
      %249 = sbr.rel (0) target = $region13
    $region12: #{tpu_custom_call.1} parent=1 // pred_region
      // Predicated region
      $region14: #{tpu_custom_call.1} parent=12 // pred_check
        _
      $region15: #{tpu_custom_call.1} parent=12 // pred_check_branch
        %251 = sbr.rel (0) target = $region17
      $region16: #{tpu_custom_call.1} parent=12 // pred_region
        // Predicated region
        $region18: #{tpu_custom_call.1} parent=16 // pred_check
          _
        $region19: #{tpu_custom_call.1} parent=16 // pred_check_branch
          %253 = sbr.rel (0) target = $region21
        $region20: #{tpu_custom_call.1} parent=16 // pred_region
          // Predicated region
          $region33: #{tpu_custom_call.1} parent=20 // pred_check
            _
          $region34: #{tpu_custom_call.1} parent=20 // pred_check_branch
            %268 = sbr.rel (0) target = $region36
          $region35: #{tpu_custom_call.1} parent=20 // pred_region
            loop: start=0, step=1, limit=1
            $region37: #{tpu_custom_call.1} parent=35 // loop_pre_header
              _
            $region38: #{tpu_custom_call.1} parent=35 // loop_header
              %s270 = sphi 0, %s274
              %p271 = scmp.ge.s32.totalorder %s270, 1
              %s275 = sphi [#allocation4], [#allocation4]
              %s276 = sphi %s1, %s1
            $region39: #{tpu_custom_call.1} parent=35 // loop_header_branch
              %273 = sbr.rel (%p271) target = $region43
            $region40: #{tpu_custom_call.1} parent=35 // loop_body
              %v277 = vld [vmem:[%s275] sm:$0xff]
              %278 = vst [vmem:[%s276] sm:$0xff] %v277
            $region41: #{tpu_custom_call.1} parent=35 // loop_footer
              %s274 = sadd.s32 1, %s270
            $region42: #{tpu_custom_call.1} parent=35 // loop_footer_branch
              %269 = sbr.rel target = $region38
            $region43: #{tpu_custom_call.1} parent=35 // loop_exit
              _
          $region36: #{tpu_custom_call.1} parent=20 // pred_fallthru
            _
          // Predicated region
          $region44: #{tpu_custom_call.1} parent=20 // pred_check
            _
          $region45: #{tpu_custom_call.1} parent=20 // pred_check_branch
            %280 = sbr.rel target = $region47
          $region46: #{tpu_custom_call.1} parent=20 // pred_region
            _
          $region47: #{tpu_custom_call.1} parent=20 // pred_fallthru
            _
        $region21: #{tpu_custom_call.1} parent=16 // pred_fallthru
          _
        // Predicated region
        $region22: #{tpu_custom_call.1} parent=16 // pred_check
          _
        $region23: #{tpu_custom_call.1} parent=16 // pred_check_branch
          %255 = sbr.rel target = $region25
        $region24: #{tpu_custom_call.1} parent=16 // pred_region
          loop: start=0, step=1, limit=1
          $region26: #{tpu_custom_call.1} parent=24 // loop_pre_header
            _
          $region27: #{tpu_custom_call.1} parent=24 // loop_header
            %s258 = sphi 0, %s262
            %p259 = scmp.ge.s32.totalorder %s258, 1
            %s263 = sphi [#allocation4], [#allocation4]
            %s264 = sphi %s1, %s1
          $region28: #{tpu_custom_call.1} parent=24 // loop_header_branch
            %261 = sbr.rel (%p259) target = $region32
          $region29: #{tpu_custom_call.1} parent=24 // loop_body
            %v265 = vld [vmem:[%s263] sm:$0xff]
            %266 = vst [vmem:[%s264] sm:$0xff] %v265
          $region30: #{tpu_custom_call.1} parent=24 // loop_footer
            %s262 = sadd.s32 1, %s258
          $region31: #{tpu_custom_call.1} parent=24 // loop_footer_branch
            %257 = sbr.rel target = $region27
          $region32: #{tpu_custom_call.1} parent=24 // loop_exit
            _
        $region25: #{tpu_custom_call.1} parent=16 // pred_fallthru
          _
      $region17: #{tpu_custom_call.1} parent=12 // pred_fallthru
        _
      %281 = vnop
    $region13: #{tpu_custom_call.1} parent=1 // pred_fallthru
      _
    // Predicated region
    $region48: #{tpu_custom_call.1} parent=1 // pred_check
      _
    $region49: #{tpu_custom_call.1} parent=1 // pred_check_branch
      %283 = sbr.rel (0) target = $region51
    $region50: #{tpu_custom_call.1} parent=1 // pred_region
      _
    $region51: #{tpu_custom_call.1} parent=1 // pred_fallthru
      _
    %284 = vsyncpa [#allocation3], 1

</llo_original>
